<compile_context>
chip_gen: v7x
topology: tpu7x:2x2x1
jax: 0.10.0
libtpu: 0.0.40
codegen_flags: <defaults>
</compile_context>

<pallas_src>
import jax
import jax.numpy as jnp
from jax import lax
from jax.experimental import pallas as pl
from jax.experimental.pallas import tpu as pltpu


def rnn_seq_kernel(xs_ref, h0_ref, wx_ref, wh_ref, b_ref, out_ref, hid_ref, fused_scr):
    T = xs_ref.shape[0]
    H = wh_ref.shape[0]

    # (1) Hoisted input projection: no sequential dependence, so batch all T
    #     rows through the MXU at once (fills sublanes) and fold in the bias.
    fused_scr[...] = (
        jnp.dot(xs_ref[...], wx_ref[...], preferred_element_type=jnp.float32)
        + b_ref[...]
    )  # (T, H+O) = xproj rows

    wh = wh_ref[...]  # (H, H+O), VMEM-resident for the whole recurrence

    # (2) Serial recurrence: each step is one (1,H)x(H,H+O) matvec plus an add.
    #     The fused row overwrites its own xproj row in the scratch; softmax is
    #     deferred to after the loop so it never sits on the serial chain.
    def step(t, h):
        fused = fused_scr[pl.ds(t, 1), :] + jnp.dot(
            h, wh, preferred_element_type=jnp.float32
        )  # (1, H+O)
        fused_scr[pl.ds(t, 1), :] = fused
        return fused[:, :H]  # new hidden, carried to step t+1

    lax.fori_loop(0, T, step, h0_ref[...], unroll=True)

    # (3) Epilogue (off the critical path): split heads, one batched softmax
    #     over all T logit rows, one full-slab store per output.
    fused_all = fused_scr[...]                       # (T, H+O)
    hid_ref[...] = fused_all[:, :H]                  # i2h head, all steps

    logits = fused_all[:, H:]                        # i2o head, all steps
    m = jnp.max(logits, axis=-1, keepdims=True)
    e = jnp.exp(logits - m)
    denom = jnp.sum(e, axis=-1, keepdims=True)
    out_ref[...] = e / denom                         # exact softmax (rows sum to 1)


def make_params(w_i2h, b_i2h, w_i2o, b_i2o, input_size):
    """One-time weight fusion (done OUTSIDE any step loop).

    torch layout: w_i2h (H, I+H), w_i2o (O, I+H)
    returns:      W_x (I, H+O), W_h (H, H+O), b (1, H+O)
    """
    w_all = jnp.concatenate([w_i2h.T, w_i2o.T], axis=1).astype(jnp.float32)  # (I+H, H+O)
    w_x = w_all[:input_size]                                                 # (I, H+O)
    w_h = w_all[input_size:]                                                 # (H, H+O)
    b = jnp.concatenate([b_i2h, b_i2o]).astype(jnp.float32)[None, :]         # (1, H+O)
    return w_x, w_h, b


def rnn_forward_sequence(xs, h0, w_x, w_h, b):
    """Run T recurrent steps in a single pallas_call / single grid step.

    xs: (T, I) inputs, h0: (1, H) initial hidden.
    Returns (outputs (T, O) softmaxed, hiddens (T, H))."""
    T, I = xs.shape
    H = w_h.shape[0]
    F = w_x.shape[1]           # H + O
    O = F - H

    xs = xs.astype(jnp.float32)
    h0 = h0.astype(jnp.float32)

    grid_spec = pltpu.PrefetchScalarGridSpec(
        num_scalar_prefetch=0,
        grid=(1,),
        in_specs=[
            pl.BlockSpec((T, I), lambda i: (0, 0)),     # whole sequence of inputs
            pl.BlockSpec((1, H), lambda i: (0, 0)),     # initial hidden
            pl.BlockSpec((I, F), lambda i: (0, 0)),     # fused input weights
            pl.BlockSpec((H, F), lambda i: (0, 0)),     # fused recurrent weights
            pl.BlockSpec((1, F), lambda i: (0, 0)),     # fused bias
        ],
        out_specs=(
            pl.BlockSpec((T, O), lambda i: (0, 0)),     # softmax outputs (one store)
            pl.BlockSpec((T, H), lambda i: (0, 0)),     # per-step hiddens (one store)
        ),
        scratch_shapes=[pltpu.VMEM((T, F), jnp.float32)],  # xproj -> fused rows
    )

    outs, hids = pl.pallas_call(
        rnn_seq_kernel,
        out_shape=(
            jax.ShapeDtypeStruct((T, O), jnp.float32),
            jax.ShapeDtypeStruct((T, H), jnp.float32),
        ),
        grid_spec=grid_spec,
        compiler_params=pltpu.CompilerParams(
            dimension_semantics=("arbitrary",),
        ),
    )(xs, h0, w_x, w_h, b)

    return outs, hids


def rnn_forward(input_tensor, hidden_tensor, w_x, w_h, b):
    """Single-step forward, identical semantics to the PyTorch module.

    input_tensor: (I,), hidden_tensor: (1, H) -> (output (1, O), hidden (1, H))."""
    xs = input_tensor.astype(jnp.float32).reshape(1, -1)     # unsqueeze(0) + float()
    outs, hids = rnn_forward_sequence(xs, hidden_tensor, w_x, w_h, b)
    return outs, hids                                        # T == 1 -> (1, O), (1, H)


def init_params(key, input_size, hidden_size, output_size):
    """Deterministic init mirroring nn.Linear default (U(-1/sqrt(fan_in), +))."""
    k1, k2, k3, k4 = jax.random.split(key, 4)
    fan_in = input_size + hidden_size
    bound = 1.0 / jnp.sqrt(fan_in)
    w_i2h = jax.random.uniform(k1, (hidden_size, fan_in), jnp.float32, -bound, bound)
    b_i2h = jax.random.uniform(k2, (hidden_size,), jnp.float32, -bound, bound)
    w_i2o = jax.random.uniform(k3, (output_size, fan_in), jnp.float32, -bound, bound)
    b_i2o = jax.random.uniform(k4, (output_size,), jnp.float32, -bound, bound)
    return w_i2h, b_i2h, w_i2o, b_i2o


if __name__ == "__main__":
    input_size, hidden_size, output_size = 16, 32, 8
    seq_len = 8

    key = jax.random.PRNGKey(0)
    kp, kx = jax.random.split(key)
    w_i2h, b_i2h, w_i2o, b_i2o = init_params(kp, input_size, hidden_size, output_size)

    xs = jax.random.normal(kx, (seq_len, input_size), jnp.float32)   # sequence of inputs
    h0 = jnp.zeros((1, hidden_size), jnp.float32)                    # RNN.init_hidden()

    # One-time weight fusion (hoisted out of the step loop).
    w_x, w_h, b = make_params(w_i2h, b_i2h, w_i2o, b_i2o, input_size)

    # Entire recurrence in a single pallas_call / single grid step.
    outs, hids = rnn_forward_sequence(xs, h0, w_x, w_h, b)
    jax.block_until_ready((outs, hids))

    # Reference: step-by-step plain-JAX replica of the torch forward().
    def ref_step(h, x):
        combined = jnp.concatenate([x[None, :], h], axis=1)
        new_h = combined @ w_i2h.T + b_i2h
        out = jax.nn.softmax(combined @ w_i2o.T + b_i2o, axis=1)
        return new_h, (out[0], new_h[0])

    _, (ref_outs, ref_hids) = jax.lax.scan(ref_step, h0, xs)

    assert outs.shape == (seq_len, output_size)
    assert hids.shape == (seq_len, hidden_size)
    assert jnp.allclose(hids, ref_hids, atol=2e-4)
    assert jnp.allclose(outs, ref_outs, atol=2e-4)
    # Exact softmax: rows sum to 1 within float rounding.
    assert jnp.allclose(jnp.sum(outs, axis=-1), 1.0, atol=1e-5)

    # Single-step API matching the PyTorch module exactly (T = 1 case).
    out1, hid1 = rnn_forward(xs[0], h0, w_x, w_h, b)
    assert out1.shape == (1, output_size) and hid1.shape == (1, hidden_size)
    assert jnp.allclose(out1[0], ref_outs[0], atol=2e-4)
    assert jnp.allclose(hid1[0], ref_hids[0], atol=2e-4)

    # TODO(synk): the module is batch-1 by construction; if multiple independent
    # sequences exist, add a batch dim B>=8 to x/h (and shard it across the two
    # v7x TensorCores) to lift MXU utilization above the current matvec regime.
    print("KERNEL_OK")
</pallas_src>

<mosaic_0001>
module attributes {stable_mosaic.version = 11 : i64} {
  func.func @rnn_seq_kernel(%arg0: i32, %arg1: memref<8x16xf32, #tpu.memory_space<vmem>>, %arg2: memref<1x32xf32, #tpu.memory_space<vmem>>, %arg3: memref<16x40xf32, #tpu.memory_space<vmem>>, %arg4: memref<32x40xf32, #tpu.memory_space<vmem>>, %arg5: memref<1x40xf32, #tpu.memory_space<vmem>>, %arg6: memref<8x8xf32, #tpu.memory_space<vmem>>, %arg7: memref<8x32xf32, #tpu.memory_space<vmem>>, %arg8: memref<8x40xf32, #tpu.memory_space<vmem>>) attributes {dimension_semantics = [#tpu.dimension_semantics<arbitrary>], iteration_bounds = array<i64: 1>, scalar_prefetch = 0 : i64, scratch_operands = 1 : i64, tpu.core_type = #tpu.core_type<tc>, window_params = [{pipeline_mode = #tpu.pipeline_mode<synchronous>, transform_indices = @transform_0, window_bounds = array<i64: 8, 16>}, {pipeline_mode = #tpu.pipeline_mode<synchronous>, transform_indices = @transform_1, window_bounds = array<i64: 1, 32>}, {pipeline_mode = #tpu.pipeline_mode<synchronous>, transform_indices = @transform_2, window_bounds = array<i64: 16, 40>}, {pipeline_mode = #tpu.pipeline_mode<synchronous>, transform_indices = @transform_3, window_bounds = array<i64: 32, 40>}, {pipeline_mode = #tpu.pipeline_mode<synchronous>, transform_indices = @transform_4, window_bounds = array<i64: 1, 40>}, {pipeline_mode = #tpu.pipeline_mode<synchronous>, transform_indices = @transform_5, window_bounds = array<i64: 8, 8>}, {pipeline_mode = #tpu.pipeline_mode<synchronous>, transform_indices = @transform_6, window_bounds = array<i64: 8, 32>}]} {
    %c0 = arith.constant 0 : index
    %c0_0 = arith.constant 0 : index
    %0 = vector.load %arg1[%c0, %c0_0] : memref<8x16xf32, #tpu.memory_space<vmem>>, vector<8x16xf32>
    %c0_1 = arith.constant 0 : index
    %c0_2 = arith.constant 0 : index
    %1 = vector.load %arg3[%c0_1, %c0_2] : memref<16x40xf32, #tpu.memory_space<vmem>>, vector<16x40xf32>
    %cst = arith.constant dense<0.000000e+00> : vector<8x40xf32>
    %2 = tpu.matmul %0, %1, %cst {dimension_numbers = #tpu.dot_dimension_numbers<[1], [0], [0], [1], [0, 0, 1, 1], [], []>} : vector<8x16xf32>, vector<16x40xf32>, vector<8x40xf32> -> vector<8x40xf32>
    %c0_3 = arith.constant 0 : index
    %c0_4 = arith.constant 0 : index
    %3 = vector.load %arg5[%c0_3, %c0_4] : memref<1x40xf32, #tpu.memory_space<vmem>>, vector<1x40xf32>
    %4 = vector.broadcast %3 : vector<1x40xf32> to vector<8x40xf32>
    %5 = arith.addf %2, %4 : vector<8x40xf32>
    %c0_5 = arith.constant 0 : index
    %c0_6 = arith.constant 0 : index
    %6 = vector.load %arg8[%c0_5, %c0_6] : memref<8x40xf32, #tpu.memory_space<vmem>>, vector<8x40xf32>
    tpu.vector_store %arg8[%c0_5, %c0_6], %5 {strides = array<i32>} : memref<8x40xf32, #tpu.memory_space<vmem>>, vector<8x40xf32>,
    %c0_7 = arith.constant 0 : index
    %c0_8 = arith.constant 0 : index
    %7 = vector.load %arg4[%c0_7, %c0_8] : memref<32x40xf32, #tpu.memory_space<vmem>>, vector<32x40xf32>
    %c0_9 = arith.constant 0 : index
    %c0_10 = arith.constant 0 : index
    %8 = vector.load %arg2[%c0_9, %c0_10] : memref<1x32xf32, #tpu.memory_space<vmem>>, vector<1x32xf32>
    %c0_i32 = arith.constant 0 : i32
    %9 = arith.index_cast %c0_i32 : i32 to index
    %c0_11 = arith.constant 0 : index
    %10 = vector.load %arg8[%9, %c0_11] : memref<8x40xf32, #tpu.memory_space<vmem>>, vector<1x40xf32>
    %cst_12 = arith.constant dense<0.000000e+00> : vector<1x40xf32>
    %11 = tpu.matmul %8, %7, %cst_12 {dimension_numbers = #tpu.dot_dimension_numbers<[1], [0], [0], [1], [0, 0, 1, 1], [], []>} : vector<1x32xf32>, vector<32x40xf32>, vector<1x40xf32> -> vector<1x40xf32>
    %12 = arith.addf %10, %11 : vector<1x40xf32>
    %13 = arith.index_cast %c0_i32 : i32 to index
    %c0_13 = arith.constant 0 : index
    %14 = vector.load %arg8[%13, %c0_13] : memref<8x40xf32, #tpu.memory_space<vmem>>, vector<1x40xf32>
    tpu.vector_store %arg8[%13, %c0_13], %12 {strides = array<i32>} : memref<8x40xf32, #tpu.memory_space<vmem>>, vector<1x40xf32>,
    %15 = vector.extract_strided_slice %12 {offsets = [0, 0], sizes = [1, 32], strides = [1, 1]} : vector<1x40xf32> to vector<1x32xf32>
    %c1_i32 = arith.constant 1 : i32
    %16 = arith.index_cast %c1_i32 : i32 to index
    %c0_14 = arith.constant 0 : index
    %17 = vector.load %arg8[%16, %c0_14] : memref<8x40xf32, #tpu.memory_space<vmem>>, vector<1x40xf32>
    %cst_15 = arith.constant dense<0.000000e+00> : vector<1x40xf32>
    %18 = tpu.matmul %15, %7, %cst_15 {dimension_numbers = #tpu.dot_dimension_numbers<[1], [0], [0], [1], [0, 0, 1, 1], [], []>} : vector<1x32xf32>, vector<32x40xf32>, vector<1x40xf32> -> vector<1x40xf32>
    %19 = arith.addf %17, %18 : vector<1x40xf32>
    %20 = arith.index_cast %c1_i32 : i32 to index
    %c0_16 = arith.constant 0 : index
    %21 = vector.load %arg8[%20, %c0_16] : memref<8x40xf32, #tpu.memory_space<vmem>>, vector<1x40xf32>
    tpu.vector_store %arg8[%20, %c0_16], %19 {strides = array<i32>} : memref<8x40xf32, #tpu.memory_space<vmem>>, vector<1x40xf32>,
    %22 = vector.extract_strided_slice %19 {offsets = [0, 0], sizes = [1, 32], strides = [1, 1]} : vector<1x40xf32> to vector<1x32xf32>
    %c2_i32 = arith.constant 2 : i32
    %23 = arith.index_cast %c2_i32 : i32 to index
    %c0_17 = arith.constant 0 : index
    %24 = vector.load %arg8[%23, %c0_17] : memref<8x40xf32, #tpu.memory_space<vmem>>, vector<1x40xf32>
    %cst_18 = arith.constant dense<0.000000e+00> : vector<1x40xf32>
    %25 = tpu.matmul %22, %7, %cst_18 {dimension_numbers = #tpu.dot_dimension_numbers<[1], [0], [0], [1], [0, 0, 1, 1], [], []>} : vector<1x32xf32>, vector<32x40xf32>, vector<1x40xf32> -> vector<1x40xf32>
    %26 = arith.addf %24, %25 : vector<1x40xf32>
    %27 = arith.index_cast %c2_i32 : i32 to index
    %c0_19 = arith.constant 0 : index
    %28 = vector.load %arg8[%27, %c0_19] : memref<8x40xf32, #tpu.memory_space<vmem>>, vector<1x40xf32>
    tpu.vector_store %arg8[%27, %c0_19], %26 {strides = array<i32>} : memref<8x40xf32, #tpu.memory_space<vmem>>, vector<1x40xf32>,
    %29 = vector.extract_strided_slice %26 {offsets = [0, 0], sizes = [1, 32], strides = [1, 1]} : vector<1x40xf32> to vector<1x32xf32>
    %c3_i32 = arith.constant 3 : i32
    %30 = arith.index_cast %c3_i32 : i32 to index
    %c0_20 = arith.constant 0 : index
    %31 = vector.load %arg8[%30, %c0_20] : memref<8x40xf32, #tpu.memory_space<vmem>>, vector<1x40xf32>
    %cst_21 = arith.constant dense<0.000000e+00> : vector<1x40xf32>
    %32 = tpu.matmul %29, %7, %cst_21 {dimension_numbers = #tpu.dot_dimension_numbers<[1], [0], [0], [1], [0, 0, 1, 1], [], []>} : vector<1x32xf32>, vector<32x40xf32>, vector<1x40xf32> -> vector<1x40xf32>
    %33 = arith.addf %31, %32 : vector<1x40xf32>
    %34 = arith.index_cast %c3_i32 : i32 to index
    %c0_22 = arith.constant 0 : index
    %35 = vector.load %arg8[%34, %c0_22] : memref<8x40xf32, #tpu.memory_space<vmem>>, vector<1x40xf32>
    tpu.vector_store %arg8[%34, %c0_22], %33 {strides = array<i32>} : memref<8x40xf32, #tpu.memory_space<vmem>>, vector<1x40xf32>,
    %36 = vector.extract_strided_slice %33 {offsets = [0, 0], sizes = [1, 32], strides = [1, 1]} : vector<1x40xf32> to vector<1x32xf32>
    %c4_i32 = arith.constant 4 : i32
    %37 = arith.index_cast %c4_i32 : i32 to index
    %c0_23 = arith.constant 0 : index
    %38 = vector.load %arg8[%37, %c0_23] : memref<8x40xf32, #tpu.memory_space<vmem>>, vector<1x40xf32>
    %cst_24 = arith.constant dense<0.000000e+00> : vector<1x40xf32>
    %39 = tpu.matmul %36, %7, %cst_24 {dimension_numbers = #tpu.dot_dimension_numbers<[1], [0], [0], [1], [0, 0, 1, 1], [], []>} : vector<1x32xf32>, vector<32x40xf32>, vector<1x40xf32> -> vector<1x40xf32>
    %40 = arith.addf %38, %39 : vector<1x40xf32>
    %41 = arith.index_cast %c4_i32 : i32 to index
    %c0_25 = arith.constant 0 : index
    %42 = vector.load %arg8[%41, %c0_25] : memref<8x40xf32, #tpu.memory_space<vmem>>, vector<1x40xf32>
    tpu.vector_store %arg8[%41, %c0_25], %40 {strides = array<i32>} : memref<8x40xf32, #tpu.memory_space<vmem>>, vector<1x40xf32>,
    %43 = vector.extract_strided_slice %40 {offsets = [0, 0], sizes = [1, 32], strides = [1, 1]} : vector<1x40xf32> to vector<1x32xf32>
    %c5_i32 = arith.constant 5 : i32
    %44 = arith.index_cast %c5_i32 : i32 to index
    %c0_26 = arith.constant 0 : index
    %45 = vector.load %arg8[%44, %c0_26] : memref<8x40xf32, #tpu.memory_space<vmem>>, vector<1x40xf32>
    %cst_27 = arith.constant dense<0.000000e+00> : vector<1x40xf32>
    %46 = tpu.matmul %43, %7, %cst_27 {dimension_numbers = #tpu.dot_dimension_numbers<[1], [0], [0], [1], [0, 0, 1, 1], [], []>} : vector<1x32xf32>, vector<32x40xf32>, vector<1x40xf32> -> vector<1x40xf32>
    %47 = arith.addf %45, %46 : vector<1x40xf32>
    %48 = arith.index_cast %c5_i32 : i32 to index
    %c0_28 = arith.constant 0 : index
    %49 = vector.load %arg8[%48, %c0_28] : memref<8x40xf32, #tpu.memory_space<vmem>>, vector<1x40xf32>
    tpu.vector_store %arg8[%48, %c0_28], %47 {strides = array<i32>} : memref<8x40xf32, #tpu.memory_space<vmem>>, vector<1x40xf32>,
    %50 = vector.extract_strided_slice %47 {offsets = [0, 0], sizes = [1, 32], strides = [1, 1]} : vector<1x40xf32> to vector<1x32xf32>
    %c6_i32 = arith.constant 6 : i32
    %51 = arith.index_cast %c6_i32 : i32 to index
    %c0_29 = arith.constant 0 : index
    %52 = vector.load %arg8[%51, %c0_29] : memref<8x40xf32, #tpu.memory_space<vmem>>, vector<1x40xf32>
    %cst_30 = arith.constant dense<0.000000e+00> : vector<1x40xf32>
    %53 = tpu.matmul %50, %7, %cst_30 {dimension_numbers = #tpu.dot_dimension_numbers<[1], [0], [0], [1], [0, 0, 1, 1], [], []>} : vector<1x32xf32>, vector<32x40xf32>, vector<1x40xf32> -> vector<1x40xf32>
    %54 = arith.addf %52, %53 : vector<1x40xf32>
    %55 = arith.index_cast %c6_i32 : i32 to index
    %c0_31 = arith.constant 0 : index
    %56 = vector.load %arg8[%55, %c0_31] : memref<8x40xf32, #tpu.memory_space<vmem>>, vector<1x40xf32>
    tpu.vector_store %arg8[%55, %c0_31], %54 {strides = array<i32>} : memref<8x40xf32, #tpu.memory_space<vmem>>, vector<1x40xf32>,
    %57 = vector.extract_strided_slice %54 {offsets = [0, 0], sizes = [1, 32], strides = [1, 1]} : vector<1x40xf32> to vector<1x32xf32>
    %c7_i32 = arith.constant 7 : i32
    %58 = arith.index_cast %c7_i32 : i32 to index
    %c0_32 = arith.constant 0 : index
    %59 = vector.load %arg8[%58, %c0_32] : memref<8x40xf32, #tpu.memory_space<vmem>>, vector<1x40xf32>
    %cst_33 = arith.constant dense<0.000000e+00> : vector<1x40xf32>
    %60 = tpu.matmul %57, %7, %cst_33 {dimension_numbers = #tpu.dot_dimension_numbers<[1], [0], [0], [1], [0, 0, 1, 1], [], []>} : vector<1x32xf32>, vector<32x40xf32>, vector<1x40xf32> -> vector<1x40xf32>
    %61 = arith.addf %59, %60 : vector<1x40xf32>
    %62 = arith.index_cast %c7_i32 : i32 to index
    %c0_34 = arith.constant 0 : index
    %63 = vector.load %arg8[%62, %c0_34] : memref<8x40xf32, #tpu.memory_space<vmem>>, vector<1x40xf32>
    tpu.vector_store %arg8[%62, %c0_34], %61 {strides = array<i32>} : memref<8x40xf32, #tpu.memory_space<vmem>>, vector<1x40xf32>,
    %64 = vector.extract_strided_slice %61 {offsets = [0, 0], sizes = [1, 32], strides = [1, 1]} : vector<1x40xf32> to vector<1x32xf32>
    %c8_i32 = arith.constant 8 : i32
    %c0_35 = arith.constant 0 : index
    %c0_36 = arith.constant 0 : index
    %65 = vector.load %arg8[%c0_35, %c0_36] : memref<8x40xf32, #tpu.memory_space<vmem>>, vector<8x40xf32>
    %66 = vector.extract_strided_slice %65 {offsets = [0, 0], sizes = [8, 32], strides = [1, 1]} : vector<8x40xf32> to vector<8x32xf32>
    %c0_37 = arith.constant 0 : index
    %c0_38 = arith.constant 0 : index
    %67 = vector.load %arg7[%c0_37, %c0_38] : memref<8x32xf32, #tpu.memory_space<vmem>>, vector<8x32xf32>
    tpu.vector_store %arg7[%c0_37, %c0_38], %66 {strides = array<i32>} : memref<8x32xf32, #tpu.memory_space<vmem>>, vector<8x32xf32>,
    %68 = vector.extract_strided_slice %65 {offsets = [0, 32], sizes = [8, 8], strides = [1, 1]} : vector<8x40xf32> to vector<8x8xf32>
    %cst_39 = arith.constant dense<0xFF800000> : vector<8xf32>
    %69 = vector.multi_reduction <maximumf>, %68, %cst_39 [1] : vector<8x8xf32> to vector<8xf32>
    %70 = vector.shape_cast %69 : vector<8xf32> to vector<8x1xf32>
    %71 = vector.broadcast %70 : vector<8x1xf32> to vector<8x8xf32>
    %72 = arith.subf %68, %71 : vector<8x8xf32>
    %73 = math.exp %72 : vector<8x8xf32>
    %cst_40 = arith.constant dense<0.000000e+00> : vector<8xf32>
    %74 = vector.multi_reduction <add>, %73, %cst_40 [1] : vector<8x8xf32> to vector<8xf32>
    %75 = vector.shape_cast %74 : vector<8xf32> to vector<8x1xf32>
    %76 = vector.broadcast %75 : vector<8x1xf32> to vector<8x8xf32>
    %77 = arith.divf %73, %76 : vector<8x8xf32>
    %c0_41 = arith.constant 0 : index
    %c0_42 = arith.constant 0 : index
    %78 = vector.load %arg6[%c0_41, %c0_42] : memref<8x8xf32, #tpu.memory_space<vmem>>, vector<8x8xf32>
    tpu.vector_store %arg6[%c0_41, %c0_42], %77 {strides = array<i32>} : memref<8x8xf32, #tpu.memory_space<vmem>>, vector<8x8xf32>,
    return
  }
  func.func @transform_0(%arg0: i32) -> (i32, i32) {
    %c0_i32 = arith.constant 0 : i32
    %c0_i32_0 = arith.constant 0 : i32
    %c0_i32_1 = arith.constant 0 : i32
    return %c0_i32, %c0_i32_0 : i32, i32
  }
  func.func @transform_1(%arg0: i32) -> (i32, i32) {
    %c0_i32 = arith.constant 0 : i32
    %c0_i32_0 = arith.constant 0 : i32
    %c0_i32_1 = arith.constant 0 : i32
    return %c0_i32, %c0_i32_0 : i32, i32
  }
  func.func @transform_2(%arg0: i32) -> (i32, i32) {
    %c0_i32 = arith.constant 0 : i32
    %c0_i32_0 = arith.constant 0 : i32
    %c0_i32_1 = arith.constant 0 : i32
    return %c0_i32, %c0_i32_0 : i32, i32
  }
  func.func @transform_3(%arg0: i32) -> (i32, i32) {
    %c0_i32 = arith.constant 0 : i32
    %c0_i32_0 = arith.constant 0 : i32
    %c0_i32_1 = arith.constant 0 : i32
    return %c0_i32, %c0_i32_0 : i32, i32
  }
  func.func @transform_4(%arg0: i32) -> (i32, i32) {
    %c0_i32 = arith.constant 0 : i32
    %c0_i32_0 = arith.constant 0 : i32
    %c0_i32_1 = arith.constant 0 : i32
    return %c0_i32, %c0_i32_0 : i32, i32
  }
  func.func @transform_5(%arg0: i32) -> (i32, i32) {
    %c0_i32 = arith.constant 0 : i32
    %c0_i32_0 = arith.constant 0 : i32
    %c0_i32_1 = arith.constant 0 : i32
    return %c0_i32, %c0_i32_0 : i32, i32
  }
  func.func @transform_6(%arg0: i32) -> (i32, i32) {
    %c0_i32 = arith.constant 0 : i32
    %c0_i32_0 = arith.constant 0 : i32
    %c0_i32_1 = arith.constant 0 : i32
    return %c0_i32, %c0_i32_0 : i32, i32
  }
}

</mosaic_0001>

<llo_original>
// kernel: tpu_custom_call.1
$region0: #{tpu_custom_call.1}
  #allocation0 [shape = 'u32[]', space=smem, size = 0x4, offset = 0x4, fixed_abs, tag = 'smem constant byte address 0x4 - core index']
  #allocation1 [shape = 'u32[144,128]{1,0:T(1,128)}', space=vmem, size = 0x12000, scoped, tag = 'internal scratch']
  #allocation2 [shape = 'f32[8,40]{1,0:T(8,128)}', space=vmem, size = 0x1000, scoped, tag = 'scratch operand']
  %s0 = inlined_call_operand.hbm [shape: f32[8,16], index: 0, kind: input, shape index: {}]
  %s1 = inlined_call_operand.vmem [shape: f32[1,32], index: 1, kind: input, shape index: {}]
  %s2 = inlined_call_operand.hbm [shape: f32[16,40], index: 2, kind: input, shape index: {}]
  %s3 = inlined_call_operand.hbm [shape: f32[32,40], index: 3, kind: input, shape index: {}]
  %s4 = inlined_call_operand.vmem [shape: f32[1,40], index: 4, kind: input, shape index: {}]
  %s5 = inlined_call_operand.hbm [shape: f32[8,8], index: 5, kind: output, shape index: {0}]
  %s6 = inlined_call_operand.hbm [shape: f32[8,32], index: 6, kind: output, shape index: {1}]
  %7 = xla_tuple %s5, %s6
  %s8 = sld [smem:[#allocation0]]
  $region50: #{tpu_custom_call.1} parent=0
    _
  %s10 = ssub.s32 1, %s8
  %s11 = scalar_select 0, %s10, %s8
  $region1: #{tpu_custom_call.1} parent=0
    #allocation3 [shape = 'u8[4096]{0}', space=vmem, size = 0x1000, scoped, tag = 'input window, operand 0, single buffered']
    #allocation4 [shape = 's32[1]{0}', space=sflag, size = 0x4, scoped, tag = 'scoped memory for tpu_custom_call.1']
    #allocation5 [shape = 's32[1]{0}', space=sflag, size = 0x4, scoped, tag = 'scoped memory for tpu_custom_call.1']
    #allocation6 [shape = 'u8[8192]{0}', space=vmem, size = 0x2000, scoped, tag = 'input window, operand 2, single buffered']
    #allocation7 [shape = 's32[1]{0}', space=sflag, size = 0x4, scoped, tag = 'scoped memory for tpu_custom_call.1']
    #allocation8 [shape = 'u8[16384]{0}', space=vmem, size = 0x4000, scoped, tag = 'input window, operand 3, single buffered']
    #allocation9 [shape = 'u8[4096]{0}', space=vmem, size = 0x1000, scoped, tag = 'output window, operand 0, single buffered']
    #allocation10 [shape = 'u8[4096]{0}', space=vmem, size = 0x1000, scoped, tag = 'output window, operand 1, single buffered']
    #allocation11 [shape = 's32[1]{0}', space=sflag, size = 0x4, scoped, tag = 'scoped memory for tpu_custom_call.1']
    %12 = vsyncpa [#allocation4], 0
    %13 = vsyncpa [#allocation7], 0
    %14 = vsyncpa [#allocation5], 0
    %15 = vsyncpa [#allocation11], 0
    // Predicated region
    $region2: #{tpu_custom_call.1} parent=1 // pred_check
      _
    $region3: #{tpu_custom_call.1} parent=1 // pred_check_branch
      %17 = sbr.rel (0) target = $region5
    $region4: #{tpu_custom_call.1} parent=1 // pred_region
      %s19 = ssub.s32 128, 128
      %20 = vsyncadd [#allocation4], %s19
      %s22 = sshll.u32 [#allocation3], 4
      %s23 = int_to_ptr.vmem [resolvable:$true] %s22
      %25 = dma.hbm_to_vmem [thread:$0]  %s0, 128, %s23, [#allocation4]
    $region5: #{tpu_custom_call.1} parent=1 // pred_fallthru
      _
    // Predicated region
    $region6: #{tpu_custom_call.1} parent=1 // pred_check
      _
    $region7: #{tpu_custom_call.1} parent=1 // pred_check_branch
      %27 = sbr.rel (0) target = $region9
    $region8: #{tpu_custom_call.1} parent=1 // pred_region
      _
    $region9: #{tpu_custom_call.1} parent=1 // pred_fallthru
      _
    // Predicated region
    $region10: #{tpu_custom_call.1} parent=1 // pred_check
      _
    $region11: #{tpu_custom_call.1} parent=1 // pred_check_branch
      %29 = sbr.rel (0) target = $region13
    $region12: #{tpu_custom_call.1} parent=1 // pred_region
      %s31 = ssub.s32 256, 256
      %32 = vsyncadd [#allocation7], %s31
      %s33 = sshll.u32 [#allocation6], 4
      %s34 = int_to_ptr.vmem [resolvable:$true] %s33
      %39 = dma.hbm_to_vmem [thread:$0]  %s2, 256, %s34, [#allocation7], 128, 128, 8
    $region13: #{tpu_custom_call.1} parent=1 // pred_fallthru
      _
    // Predicated region
    $region14: #{tpu_custom_call.1} parent=1 // pred_check
      _
    $region15: #{tpu_custom_call.1} parent=1 // pred_check_branch
      %41 = sbr.rel (0) target = $region17
    $region16: #{tpu_custom_call.1} parent=1 // pred_region
      %s43 = ssub.s32 512, 512
      %44 = vsyncadd [#allocation7], %s43
      %s45 = sshll.u32 [#allocation8], 4
      %s46 = int_to_ptr.vmem [resolvable:$true] %s45
      %51 = dma.hbm_to_vmem [thread:$0]  %s3, 512, %s46, [#allocation7], 128, 128, 8
    $region17: #{tpu_custom_call.1} parent=1 // pred_fallthru
      _
    // Predicated region
    $region18: #{tpu_custom_call.1} parent=1 // pred_check
      _
    $region19: #{tpu_custom_call.1} parent=1 // pred_check_branch
      %53 = sbr.rel (0) target = $region21
    $region20: #{tpu_custom_call.1} parent=1 // pred_region
      _
    $region21: #{tpu_custom_call.1} parent=1 // pred_fallthru
      _
    // Predicated region
    $region22: #{tpu_custom_call.1} parent=1 // pred_check
      _
    $region23: #{tpu_custom_call.1} parent=1 // pred_check_branch
      %55 = sbr.rel (0) target = $region25
    $region24: #{tpu_custom_call.1} parent=1 // pred_region
      %56 = dma.done [#allocation4], 128
    $region25: #{tpu_custom_call.1} parent=1 // pred_fallthru
      _
    // Predicated region
    $region26: #{tpu_custom_call.1} parent=1 // pred_check
      _
    $region27: #{tpu_custom_call.1} parent=1 // pred_check_branch
      %58 = sbr.rel (0) target = $region29
    $region28: #{tpu_custom_call.1} parent=1 // pred_region
      %59 = dma.done [#allocation7], 256
    $region29: #{tpu_custom_call.1} parent=1 // pred_fallthru
      _
    // Predicated region
    $region30: #{tpu_custom_call.1} parent=1 // pred_check
      _
    $region31: #{tpu_custom_call.1} parent=1 // pred_check_branch
      %61 = sbr.rel (0) target = $region33
    $region32: #{tpu_custom_call.1} parent=1 // pred_region
      %62 = dma.done [#allocation7], 512
    $region33: #{tpu_custom_call.1} parent=1 // pred_fallthru
      _
    %v63 = vld [vmem:[#allocation3] sm:$0xff]
    %v64 = vld [vmem:[#allocation6] sm:$0xff]
    %v65 = vld [vmem:[#allocation6 + $0x8] sm:$0xff]
    %v66 = vld [vmem:[%s4] sm:$0x1]
    %v68 = vlaneseq
    %v69 = vshrl.u32 %v68, 7
    %v70 = vsub.s32 0, %v69
    %v71 = vrot.slane %v66, %v70
    %vm73 = vcmask 130048
    %v75 = vsel %vm73, %v63, 0
    %77 = vmatprep.subr.mxu0 0.0
    %78 = vmatpush1.msra.mxu0 %v64
    %79 = vmatprep.subr.mxu0 0.0
    %80 = vmatpush1.msra.mxu0 %v65
    %81 = vmatprep.subr.mxu0 0.0
    %82 = vmatpush1.msra.mxu0 0.0
    %83 = vmatprep.subr.mxu0 0.0
    %84 = vmatpush1.msra.mxu0 0.0
    %85 = vmatprep.subr.mxu0 0.0
    %86 = vmatpush1.msra.mxu0 0.0
    %87 = vmatprep.subr.mxu0 0.0
    %88 = vmatpush1.msra.mxu0 0.0
    %89 = vmatprep.subr.mxu0 0.0
    %90 = vmatpush1.msra.mxu0 0.0
    %91 = vmatprep.subr.mxu0 0.0
    %92 = vmatpush1.msra.mxu0 0.0
    %93 = vmatprep.subr.mxu0 0.0
    %94 = vmatpush1.msra.mxu0 0.0
    %95 = vmatprep.subr.mxu0 0.0
    %96 = vmatpush1.msra.mxu0 0.0
    %97 = vmatprep.subr.mxu0 0.0
    %98 = vmatpush1.msra.mxu0 0.0
    %99 = vmatprep.subr.mxu0 0.0
    %100 = vmatpush1.msra.mxu0 0.0
    %101 = vmatprep.subr.mxu0 0.0
    %102 = vmatpush1.msra.mxu0 0.0
    %103 = vmatprep.subr.mxu0 0.0
    %104 = vmatpush1.msra.mxu0 0.0
    %105 = vmatprep.subr.mxu0 0.0
    %106 = vmatpush1.msra.mxu0 0.0
    %107 = vmatprep.subr.mxu0 0.0
    %108 = vmatpush1.msra.mxu0 0.0
    %109 = vmatprep.subr.mxu0 0.0
    %110 = vmatpush1.msra.mxu0 0.0
    %111 = vmatprep.subr.mxu0 0.0
    %112 = vmatpush1.msra.mxu0 0.0
    %113 = vmatprep.subr.mxu0 0.0
    %114 = vmatpush1.msra.mxu0 0.0
    %115 = vmatprep.subr.mxu0 0.0
    %116 = vmatpush1.msra.mxu0 0.0
    %117 = vmatprep.subr.mxu0 0.0
    %118 = vmatpush1.msra.mxu0 0.0
    %119 = vmatprep.subr.mxu0 0.0
    %120 = vmatpush1.msra.mxu0 0.0
    %121 = vmatprep.subr.mxu0 0.0
    %122 = vmatpush1.msra.mxu0 0.0
    %123 = vmatprep.subr.mxu0 0.0
    %124 = vmatpush1.msra.mxu0 0.0
    %125 = vmatprep.subr.mxu0 0.0
    %126 = vmatpush1.msra.mxu0 0.0
    %127 = vmatprep.subr.mxu0 0.0
    %128 = vmatpush1.msra.mxu0 0.0
    %129 = vmatprep.subr.mxu0 0.0
    %130 = vmatpush1.msra.mxu0 0.0
    %131 = vmatprep.subr.mxu0 0.0
    %132 = vmatpush1.msra.mxu0 0.0
    %133 = vmatprep.subr.mxu0 0.0
    %134 = vmatpush1.msra.mxu0 0.0
    %135 = vmatprep.subr.mxu0 0.0
    %136 = vmatpush1.msra.mxu0 0.0
    %137 = vmatprep.subr.mxu0 0.0
    %138 = vmatpush1.msra.mxu0 0.0
    %139 = vmatprep.subr.mxu0 0.0
    %140 = vmatpush1.msra.mxu0 0.0
    %141 = vmatprep.mubr.f32.mxu0 0.0
    %142 = vmatmul.mubr.f32.gmra.mrb[0].mxu0 %v75
    %v143 = vpop.f32.mrb[0].mxu0
    %v144 = vadd.f32 %v71, %v143
    %v145 = vpop.f32.mrb[0].mxu0
    %146 = vdwg.mxu0
    %vm147 = vcmask 326656
    %148 = vst.msk [vmem:[#allocation2] sm:$0xff] %vm147, %v144
    %v149 = vld [vmem:[#allocation8] sm:$0xff]
    %v150 = vld [vmem:[#allocation8 + $0x8] sm:$0xff]
    %v151 = vld [vmem:[#allocation8 + $0x10] sm:$0xff]
    %v152 = vld [vmem:[#allocation8 + $0x18] sm:$0xff]
    %v153 = vld [vmem:[%s1] sm:$0x1]
    %v154 = vld [vmem:[#allocation2] sm:$0x1]
    %vm155 = vcmask 261120
    %v157 = vsel %vm155, %v153, 0
    %159 = vmatprep.subr.mxu0 0.0
    %160 = vmatpush1.msra.mxu0 %v149
    %161 = vmatprep.subr.mxu0 0.0
    %162 = vmatpush1.msra.mxu0 %v150
    %163 = vmatprep.subr.mxu0 0.0
    %164 = vmatpush1.msra.mxu0 %v151
    %165 = vmatprep.subr.mxu0 0.0
    %166 = vmatpush1.msra.mxu0 %v152
    %167 = vmatprep.subr.mxu0 0.0
    %168 = vmatpush1.msra.mxu0 0.0
    %169 = vmatprep.subr.mxu0 0.0
    %170 = vmatpush1.msra.mxu0 0.0
    %171 = vmatprep.subr.mxu0 0.0
    %172 = vmatpush1.msra.mxu0 0.0
    %173 = vmatprep.subr.mxu0 0.0
    %174 = vmatpush1.msra.mxu0 0.0
    %175 = vmatprep.subr.mxu0 0.0
    %176 = vmatpush1.msra.mxu0 0.0
    %177 = vmatprep.subr.mxu0 0.0
    %178 = vmatpush1.msra.mxu0 0.0
    %179 = vmatprep.subr.mxu0 0.0
    %180 = vmatpush1.msra.mxu0 0.0
    %181 = vmatprep.subr.mxu0 0.0
    %182 = vmatpush1.msra.mxu0 0.0
    %183 = vmatprep.subr.mxu0 0.0
    %184 = vmatpush1.msra.mxu0 0.0
    %185 = vmatprep.subr.mxu0 0.0
    %186 = vmatpush1.msra.mxu0 0.0
    %187 = vmatprep.subr.mxu0 0.0
    %188 = vmatpush1.msra.mxu0 0.0
    %189 = vmatprep.subr.mxu0 0.0
    %190 = vmatpush1.msra.mxu0 0.0
    %191 = vmatprep.subr.mxu0 0.0
    %192 = vmatpush1.msra.mxu0 0.0
    %193 = vmatprep.subr.mxu0 0.0
    %194 = vmatpush1.msra.mxu0 0.0
    %195 = vmatprep.subr.mxu0 0.0
    %196 = vmatpush1.msra.mxu0 0.0
    %197 = vmatprep.subr.mxu0 0.0
    %198 = vmatpush1.msra.mxu0 0.0
    %199 = vmatprep.subr.mxu0 0.0
    %200 = vmatpush1.msra.mxu0 0.0
    %201 = vmatprep.subr.mxu0 0.0
    %202 = vmatpush1.msra.mxu0 0.0
    %203 = vmatprep.subr.mxu0 0.0
    %204 = vmatpush1.msra.mxu0 0.0
    %205 = vmatprep.subr.mxu0 0.0
    %206 = vmatpush1.msra.mxu0 0.0
    %207 = vmatprep.subr.mxu0 0.0
    %208 = vmatpush1.msra.mxu0 0.0
    %209 = vmatprep.subr.mxu0 0.0
    %210 = vmatpush1.msra.mxu0 0.0
    %211 = vmatprep.subr.mxu0 0.0
    %212 = vmatpush1.msra.mxu0 0.0
    %213 = vmatprep.subr.mxu0 0.0
    %214 = vmatpush1.msra.mxu0 0.0
    %215 = vmatprep.subr.mxu0 0.0
    %216 = vmatpush1.msra.mxu0 0.0
    %217 = vmatprep.subr.mxu0 0.0
    %218 = vmatpush1.msra.mxu0 0.0
    %219 = vmatprep.subr.mxu0 0.0
    %220 = vmatpush1.msra.mxu0 0.0
    %221 = vmatprep.subr.mxu0 0.0
    %222 = vmatpush1.msra.mxu0 0.0
    %223 = vmatprep.mubr.f32.mxu0 0.0
    %224 = vmatmul.mubr.f32.gmra.mrb[0].mxu0 %v157
    %v225 = vpop.f32.mrb[0].mxu0
    %v226 = vadd.f32 0.0, %v225
    %v227 = vpop.f32.mrb[0].mxu0
    %228 = vdwg.mxu0
    %v229 = vadd.f32 %v154, %v226
    %vm230 = vcmask 319488
    %231 = vst.msk [vmem:[#allocation2] sm:$0x1] %vm230, %v229
    %v232 = vld [vmem:[#allocation2 + $0x1] sm:$0x1]
    %v234 = vsel %vm155, %v229, 0
    %236 = vmatprep.subr.mxu0 0.0
    %237 = vmatpush1.msra.mxu0 %v149
    %238 = vmatprep.subr.mxu0 0.0
    %239 = vmatpush1.msra.mxu0 %v150
    %240 = vmatprep.subr.mxu0 0.0
    %241 = vmatpush1.msra.mxu0 %v151
    %242 = vmatprep.subr.mxu0 0.0
    %243 = vmatpush1.msra.mxu0 %v152
    %244 = vmatprep.subr.mxu0 0.0
    %245 = vmatpush1.msra.mxu0 0.0
    %246 = vmatprep.subr.mxu0 0.0
    %247 = vmatpush1.msra.mxu0 0.0
    %248 = vmatprep.subr.mxu0 0.0
    %249 = vmatpush1.msra.mxu0 0.0
    %250 = vmatprep.subr.mxu0 0.0
    %251 = vmatpush1.msra.mxu0 0.0
    %252 = vmatprep.subr.mxu0 0.0
    %253 = vmatpush1.msra.mxu0 0.0
    %254 = vmatprep.subr.mxu0 0.0
    %255 = vmatpush1.msra.mxu0 0.0
    %256 = vmatprep.subr.mxu0 0.0
    %257 = vmatpush1.msra.mxu0 0.0
    %258 = vmatprep.subr.mxu0 0.0
    %259 = vmatpush1.msra.mxu0 0.0
    %260 = vmatprep.subr.mxu0 0.0
    %261 = vmatpush1.msra.mxu0 0.0
    %262 = vmatprep.subr.mxu0 0.0
    %263 = vmatpush1.msra.mxu0 0.0
    %264 = vmatprep.subr.mxu0 0.0
    %265 = vmatpush1.msra.mxu0 0.0
    %266 = vmatprep.subr.mxu0 0.0
    %267 = vmatpush1.msra.mxu0 0.0
    %268 = vmatprep.subr.mxu0 0.0
    %269 = vmatpush1.msra.mxu0 0.0
    %270 = vmatprep.subr.mxu0 0.0
    %271 = vmatpush1.msra.mxu0 0.0
    %272 = vmatprep.subr.mxu0 0.0
    %273 = vmatpush1.msra.mxu0 0.0
    %274 = vmatprep.subr.mxu0 0.0
    %275 = vmatpush1.msra.mxu0 0.0
    %276 = vmatprep.subr.mxu0 0.0
    %277 = vmatpush1.msra.mxu0 0.0
    %278 = vmatprep.subr.mxu0 0.0
    %279 = vmatpush1.msra.mxu0 0.0
    %280 = vmatprep.subr.mxu0 0.0
    %281 = vmatpush1.msra.mxu0 0.0
    %282 = vmatprep.subr.mxu0 0.0
    %283 = vmatpush1.msra.mxu0 0.0
    %284 = vmatprep.subr.mxu0 0.0
    %285 = vmatpush1.msra.mxu0 0.0
    %286 = vmatprep.subr.mxu0 0.0
    %287 = vmatpush1.msra.mxu0 0.0
    %288 = vmatprep.subr.mxu0 0.0
    %289 = vmatpush1.msra.mxu0 0.0
    %290 = vmatprep.subr.mxu0 0.0
    %291 = vmatpush1.msra.mxu0 0.0
    %292 = vmatprep.subr.mxu0 0.0
    %293 = vmatpush1.msra.mxu0 0.0
    %294 = vmatprep.subr.mxu0 0.0
    %295 = vmatpush1.msra.mxu0 0.0
    %296 = vmatprep.subr.mxu0 0.0
    %297 = vmatpush1.msra.mxu0 0.0
    %298 = vmatprep.subr.mxu0 0.0
    %299 = vmatpush1.msra.mxu0 0.0
    %300 = vmatprep.mubr.f32.mxu0 0.0
    %301 = vmatmul.mubr.f32.gmra.mrb[0].mxu0 %v234
    %v302 = vpop.f32.mrb[0].mxu0
    %v303 = vadd.f32 0.0, %v302
    %v304 = vpop.f32.mrb[0].mxu0
    %305 = vdwg.mxu0
    %v306 = vadd.f32 %v232, %v303
    %307 = vst.msk [vmem:[#allocation2 + $0x1] sm:$0x1] %vm230, %v306
    %v308 = vld [vmem:[#allocation2 + $0x2] sm:$0x1]
    %v310 = vsel %vm155, %v306, 0
    %312 = vmatprep.subr.mxu0 0.0
    %313 = vmatpush1.msra.mxu0 %v149
    %314 = vmatprep.subr.mxu0 0.0
    %315 = vmatpush1.msra.mxu0 %v150
    %316 = vmatprep.subr.mxu0 0.0
    %317 = vmatpush1.msra.mxu0 %v151
    %318 = vmatprep.subr.mxu0 0.0
    %319 = vmatpush1.msra.mxu0 %v152
    %320 = vmatprep.subr.mxu0 0.0
    %321 = vmatpush1.msra.mxu0 0.0
    %322 = vmatprep.subr.mxu0 0.0
    %323 = vmatpush1.msra.mxu0 0.0
    %324 = vmatprep.subr.mxu0 0.0
    %325 = vmatpush1.msra.mxu0 0.0
    %326 = vmatprep.subr.mxu0 0.0
    %327 = vmatpush1.msra.mxu0 0.0
    %328 = vmatprep.subr.mxu0 0.0
    %329 = vmatpush1.msra.mxu0 0.0
    %330 = vmatprep.subr.mxu0 0.0
    %331 = vmatpush1.msra.mxu0 0.0
    %332 = vmatprep.subr.mxu0 0.0
    %333 = vmatpush1.msra.mxu0 0.0
    %334 = vmatprep.subr.mxu0 0.0
    %335 = vmatpush1.msra.mxu0 0.0
    %336 = vmatprep.subr.mxu0 0.0
    %337 = vmatpush1.msra.mxu0 0.0
    %338 = vmatprep.subr.mxu0 0.0
    %339 = vmatpush1.msra.mxu0 0.0
    %340 = vmatprep.subr.mxu0 0.0
    %341 = vmatpush1.msra.mxu0 0.0
    %342 = vmatprep.subr.mxu0 0.0
    %343 = vmatpush1.msra.mxu0 0.0
    %344 = vmatprep.subr.mxu0 0.0
    %345 = vmatpush1.msra.mxu0 0.0
    %346 = vmatprep.subr.mxu0 0.0
    %347 = vmatpush1.msra.mxu0 0.0
    %348 = vmatprep.subr.mxu0 0.0
    %349 = vmatpush1.msra.mxu0 0.0
    %350 = vmatprep.subr.mxu0 0.0
    %351 = vmatpush1.msra.mxu0 0.0
    %352 = vmatprep.subr.mxu0 0.0
    %353 = vmatpush1.msra.mxu0 0.0
    %354 = vmatprep.subr.mxu0 0.0
    %355 = vmatpush1.msra.mxu0 0.0
    %356 = vmatprep.subr.mxu0 0.0
    %357 = vmatpush1.msra.mxu0 0.0
    %358 = vmatprep.subr.mxu0 0.0
    %359 = vmatpush1.msra.mxu0 0.0
    %360 = vmatprep.subr.mxu0 0.0
    %361 = vmatpush1.msra.mxu0 0.0
    %362 = vmatprep.subr.mxu0 0.0
    %363 = vmatpush1.msra.mxu0 0.0
    %364 = vmatprep.subr.mxu0 0.0
    %365 = vmatpush1.msra.mxu0 0.0
    %366 = vmatprep.subr.mxu0 0.0
    %367 = vmatpush1.msra.mxu0 0.0
    %368 = vmatprep.subr.mxu0 0.0
    %369 = vmatpush1.msra.mxu0 0.0
    %370 = vmatprep.subr.mxu0 0.0
    %371 = vmatpush1.msra.mxu0 0.0
    %372 = vmatprep.subr.mxu0 0.0
    %373 = vmatpush1.msra.mxu0 0.0
    %374 = vmatprep.subr.mxu0 0.0
    %375 = vmatpush1.msra.mxu0 0.0
    %376 = vmatprep.mubr.f32.mxu0 0.0
    %377 = vmatmul.mubr.f32.gmra.mrb[0].mxu0 %v310
    %v378 = vpop.f32.mrb[0].mxu0
    %v379 = vadd.f32 0.0, %v378
    %v380 = vpop.f32.mrb[0].mxu0
    %381 = vdwg.mxu0
    %v382 = vadd.f32 %v308, %v379
    %383 = vst.msk [vmem:[#allocation2 + $0x2] sm:$0x1] %vm230, %v382
    %v384 = vld [vmem:[#allocation2 + $0x3] sm:$0x1]
    %v386 = vsel %vm155, %v382, 0
    %388 = vmatprep.subr.mxu0 0.0
    %389 = vmatpush1.msra.mxu0 %v149
    %390 = vmatprep.subr.mxu0 0.0
    %391 = vmatpush1.msra.mxu0 %v150
    %392 = vmatprep.subr.mxu0 0.0
    %393 = vmatpush1.msra.mxu0 %v151
    %394 = vmatprep.subr.mxu0 0.0
    %395 = vmatpush1.msra.mxu0 %v152
    %396 = vmatprep.subr.mxu0 0.0
    %397 = vmatpush1.msra.mxu0 0.0
    %398 = vmatprep.subr.mxu0 0.0
    %399 = vmatpush1.msra.mxu0 0.0
    %400 = vmatprep.subr.mxu0 0.0
    %401 = vmatpush1.msra.mxu0 0.0
    %402 = vmatprep.subr.mxu0 0.0
    %403 = vmatpush1.msra.mxu0 0.0
    %404 = vmatprep.subr.mxu0 0.0
    %405 = vmatpush1.msra.mxu0 0.0
    %406 = vmatprep.subr.mxu0 0.0
    %407 = vmatpush1.msra.mxu0 0.0
    %408 = vmatprep.subr.mxu0 0.0
    %409 = vmatpush1.msra.mxu0 0.0
    %410 = vmatprep.subr.mxu0 0.0
    %411 = vmatpush1.msra.mxu0 0.0
    %412 = vmatprep.subr.mxu0 0.0
    %413 = vmatpush1.msra.mxu0 0.0
    %414 = vmatprep.subr.mxu0 0.0
    %415 = vmatpush1.msra.mxu0 0.0
    %416 = vmatprep.subr.mxu0 0.0
    %417 = vmatpush1.msra.mxu0 0.0
    %418 = vmatprep.subr.mxu0 0.0
    %419 = vmatpush1.msra.mxu0 0.0
    %420 = vmatprep.subr.mxu0 0.0
    %421 = vmatpush1.msra.mxu0 0.0
    %422 = vmatprep.subr.mxu0 0.0
    %423 = vmatpush1.msra.mxu0 0.0
    %424 = vmatprep.subr.mxu0 0.0
    %425 = vmatpush1.msra.mxu0 0.0
    %426 = vmatprep.subr.mxu0 0.0
    %427 = vmatpush1.msra.mxu0 0.0
    %428 = vmatprep.subr.mxu0 0.0
    %429 = vmatpush1.msra.mxu0 0.0
    %430 = vmatprep.subr.mxu0 0.0
    %431 = vmatpush1.msra.mxu0 0.0
    %432 = vmatprep.subr.mxu0 0.0
    %433 = vmatpush1.msra.mxu0 0.0
    %434 = vmatprep.subr.mxu0 0.0
    %435 = vmatpush1.msra.mxu0 0.0
    %436 = vmatprep.subr.mxu0 0.0
    %437 = vmatpush1.msra.mxu0 0.0
    %438 = vmatprep.subr.mxu0 0.0
    %439 = vmatpush1.msra.mxu0 0.0
    %440 = vmatprep.subr.mxu0 0.0
    %441 = vmatpush1.msra.mxu0 0.0
    %442 = vmatprep.subr.mxu0 0.0
    %443 = vmatpush1.msra.mxu0 0.0
    %444 = vmatprep.subr.mxu0 0.0
    %445 = vmatpush1.msra.mxu0 0.0
    %446 = vmatprep.subr.mxu0 0.0
    %447 = vmatpush1.msra.mxu0 0.0
    %448 = vmatprep.subr.mxu0 0.0
    %449 = vmatpush1.msra.mxu0 0.0
    %450 = vmatprep.subr.mxu0 0.0
    %451 = vmatpush1.msra.mxu0 0.0
    %452 = vmatprep.mubr.f32.mxu0 0.0
    %453 = vmatmul.mubr.f32.gmra.mrb[0].mxu0 %v386
    %v454 = vpop.f32.mrb[0].mxu0
    %v455 = vadd.f32 0.0, %v454
    %v456 = vpop.f32.mrb[0].mxu0
    %457 = vdwg.mxu0
    %v458 = vadd.f32 %v384, %v455
    %459 = vst.msk [vmem:[#allocation2 + $0x3] sm:$0x1] %vm230, %v458
    %v460 = vld [vmem:[#allocation2 + $0x4] sm:$0x1]
    %v462 = vsel %vm155, %v458, 0
    %464 = vmatprep.subr.mxu0 0.0
    %465 = vmatpush1.msra.mxu0 %v149
    %466 = vmatprep.subr.mxu0 0.0
    %467 = vmatpush1.msra.mxu0 %v150
    %468 = vmatprep.subr.mxu0 0.0
    %469 = vmatpush1.msra.mxu0 %v151
    %470 = vmatprep.subr.mxu0 0.0
    %471 = vmatpush1.msra.mxu0 %v152
    %472 = vmatprep.subr.mxu0 0.0
    %473 = vmatpush1.msra.mxu0 0.0
    %474 = vmatprep.subr.mxu0 0.0
    %475 = vmatpush1.msra.mxu0 0.0
    %476 = vmatprep.subr.mxu0 0.0
    %477 = vmatpush1.msra.mxu0 0.0
    %478 = vmatprep.subr.mxu0 0.0
    %479 = vmatpush1.msra.mxu0 0.0
    %480 = vmatprep.subr.mxu0 0.0
    %481 = vmatpush1.msra.mxu0 0.0
    %482 = vmatprep.subr.mxu0 0.0
    %483 = vmatpush1.msra.mxu0 0.0
    %484 = vmatprep.subr.mxu0 0.0
    %485 = vmatpush1.msra.mxu0 0.0
    %486 = vmatprep.subr.mxu0 0.0
    %487 = vmatpush1.msra.mxu0 0.0
    %488 = vmatprep.subr.mxu0 0.0
    %489 = vmatpush1.msra.mxu0 0.0
    %490 = vmatprep.subr.mxu0 0.0
    %491 = vmatpush1.msra.mxu0 0.0
    %492 = vmatprep.subr.mxu0 0.0
    %493 = vmatpush1.msra.mxu0 0.0
    %494 = vmatprep.subr.mxu0 0.0
    %495 = vmatpush1.msra.mxu0 0.0
    %496 = vmatprep.subr.mxu0 0.0
    %497 = vmatpush1.msra.mxu0 0.0
    %498 = vmatprep.subr.mxu0 0.0
    %499 = vmatpush1.msra.mxu0 0.0
    %500 = vmatprep.subr.mxu0 0.0
    %501 = vmatpush1.msra.mxu0 0.0
    %502 = vmatprep.subr.mxu0 0.0
    %503 = vmatpush1.msra.mxu0 0.0
    %504 = vmatprep.subr.mxu0 0.0
    %505 = vmatpush1.msra.mxu0 0.0
    %506 = vmatprep.subr.mxu0 0.0
    %507 = vmatpush1.msra.mxu0 0.0
    %508 = vmatprep.subr.mxu0 0.0
    %509 = vmatpush1.msra.mxu0 0.0
    %510 = vmatprep.subr.mxu0 0.0
    %511 = vmatpush1.msra.mxu0 0.0
    %512 = vmatprep.subr.mxu0 0.0
    %513 = vmatpush1.msra.mxu0 0.0
    %514 = vmatprep.subr.mxu0 0.0
    %515 = vmatpush1.msra.mxu0 0.0
    %516 = vmatprep.subr.mxu0 0.0
    %517 = vmatpush1.msra.mxu0 0.0
    %518 = vmatprep.subr.mxu0 0.0
    %519 = vmatpush1.msra.mxu0 0.0
    %520 = vmatprep.subr.mxu0 0.0
    %521 = vmatpush1.msra.mxu0 0.0
    %522 = vmatprep.subr.mxu0 0.0
    %523 = vmatpush1.msra.mxu0 0.0
    %524 = vmatprep.subr.mxu0 0.0
    %525 = vmatpush1.msra.mxu0 0.0
    %526 = vmatprep.subr.mxu0 0.0
    %527 = vmatpush1.msra.mxu0 0.0
    %528 = vmatprep.mubr.f32.mxu0 0.0
    %529 = vmatmul.mubr.f32.gmra.mrb[0].mxu0 %v462
    %v530 = vpop.f32.mrb[0].mxu0
    %v531 = vadd.f32 0.0, %v530
    %v532 = vpop.f32.mrb[0].mxu0
    %533 = vdwg.mxu0
    %v534 = vadd.f32 %v460, %v531
    %535 = vst.msk [vmem:[#allocation2 + $0x4] sm:$0x1] %vm230, %v534
    %v536 = vld [vmem:[#allocation2 + $0x5] sm:$0x1]
    %v538 = vsel %vm155, %v534, 0
    %540 = vmatprep.subr.mxu0 0.0
    %541 = vmatpush1.msra.mxu0 %v149
    %542 = vmatprep.subr.mxu0 0.0
    %543 = vmatpush1.msra.mxu0 %v150
    %544 = vmatprep.subr.mxu0 0.0
    %545 = vmatpush1.msra.mxu0 %v151
    %546 = vmatprep.subr.mxu0 0.0
    %547 = vmatpush1.msra.mxu0 %v152
    %548 = vmatprep.subr.mxu0 0.0
    %549 = vmatpush1.msra.mxu0 0.0
    %550 = vmatprep.subr.mxu0 0.0
    %551 = vmatpush1.msra.mxu0 0.0
    %552 = vmatprep.subr.mxu0 0.0
    %553 = vmatpush1.msra.mxu0 0.0
    %554 = vmatprep.subr.mxu0 0.0
    %555 = vmatpush1.msra.mxu0 0.0
    %556 = vmatprep.subr.mxu0 0.0
    %557 = vmatpush1.msra.mxu0 0.0
    %558 = vmatprep.subr.mxu0 0.0
    %559 = vmatpush1.msra.mxu0 0.0
    %560 = vmatprep.subr.mxu0 0.0
    %561 = vmatpush1.msra.mxu0 0.0
    %562 = vmatprep.subr.mxu0 0.0
    %563 = vmatpush1.msra.mxu0 0.0
    %564 = vmatprep.subr.mxu0 0.0
    %565 = vmatpush1.msra.mxu0 0.0
    %566 = vmatprep.subr.mxu0 0.0
    %567 = vmatpush1.msra.mxu0 0.0
    %568 = vmatprep.subr.mxu0 0.0
    %569 = vmatpush1.msra.mxu0 0.0
    %570 = vmatprep.subr.mxu0 0.0
    %571 = vmatpush1.msra.mxu0 0.0
    %572 = vmatprep.subr.mxu0 0.0
    %573 = vmatpush1.msra.mxu0 0.0
    %574 = vmatprep.subr.mxu0 0.0
    %575 = vmatpush1.msra.mxu0 0.0
    %576 = vmatprep.subr.mxu0 0.0
    %577 = vmatpush1.msra.mxu0 0.0
    %578 = vmatprep.subr.mxu0 0.0
    %579 = vmatpush1.msra.mxu0 0.0
    %580 = vmatprep.subr.mxu0 0.0
    %581 = vmatpush1.msra.mxu0 0.0
    %582 = vmatprep.subr.mxu0 0.0
    %583 = vmatpush1.msra.mxu0 0.0
    %584 = vmatprep.subr.mxu0 0.0
    %585 = vmatpush1.msra.mxu0 0.0
    %586 = vmatprep.subr.mxu0 0.0
    %587 = vmatpush1.msra.mxu0 0.0
    %588 = vmatprep.subr.mxu0 0.0
    %589 = vmatpush1.msra.mxu0 0.0
    %590 = vmatprep.subr.mxu0 0.0
    %591 = vmatpush1.msra.mxu0 0.0
    %592 = vmatprep.subr.mxu0 0.0
    %593 = vmatpush1.msra.mxu0 0.0
    %594 = vmatprep.subr.mxu0 0.0
    %595 = vmatpush1.msra.mxu0 0.0
    %596 = vmatprep.subr.mxu0 0.0
    %597 = vmatpush1.msra.mxu0 0.0
    %598 = vmatprep.subr.mxu0 0.0
    %599 = vmatpush1.msra.mxu0 0.0
    %600 = vmatprep.subr.mxu0 0.0
    %601 = vmatpush1.msra.mxu0 0.0
    %602 = vmatprep.subr.mxu0 0.0
    %603 = vmatpush1.msra.mxu0 0.0
    %604 = vmatprep.mubr.f32.mxu0 0.0
    %605 = vmatmul.mubr.f32.gmra.mrb[0].mxu0 %v538
    %v606 = vpop.f32.mrb[0].mxu0
    %v607 = vadd.f32 0.0, %v606
    %v608 = vpop.f32.mrb[0].mxu0
    %609 = vdwg.mxu0
    %v610 = vadd.f32 %v536, %v607
    %611 = vst.msk [vmem:[#allocation2 + $0x5] sm:$0x1] %vm230, %v610
    %v612 = vld [vmem:[#allocation2 + $0x6] sm:$0x1]
    %v614 = vsel %vm155, %v610, 0
    %616 = vmatprep.subr.mxu0 0.0
    %617 = vmatpush1.msra.mxu0 %v149
    %618 = vmatprep.subr.mxu0 0.0
    %619 = vmatpush1.msra.mxu0 %v150
    %620 = vmatprep.subr.mxu0 0.0
    %621 = vmatpush1.msra.mxu0 %v151
    %622 = vmatprep.subr.mxu0 0.0
    %623 = vmatpush1.msra.mxu0 %v152
    %624 = vmatprep.subr.mxu0 0.0
    %625 = vmatpush1.msra.mxu0 0.0
    %626 = vmatprep.subr.mxu0 0.0
    %627 = vmatpush1.msra.mxu0 0.0
    %628 = vmatprep.subr.mxu0 0.0
    %629 = vmatpush1.msra.mxu0 0.0
    %630 = vmatprep.subr.mxu0 0.0
    %631 = vmatpush1.msra.mxu0 0.0
    %632 = vmatprep.subr.mxu0 0.0
    %633 = vmatpush1.msra.mxu0 0.0
    %634 = vmatprep.subr.mxu0 0.0
    %635 = vmatpush1.msra.mxu0 0.0
    %636 = vmatprep.subr.mxu0 0.0
    %637 = vmatpush1.msra.mxu0 0.0
    %638 = vmatprep.subr.mxu0 0.0
    %639 = vmatpush1.msra.mxu0 0.0
    %640 = vmatprep.subr.mxu0 0.0
    %641 = vmatpush1.msra.mxu0 0.0
    %642 = vmatprep.subr.mxu0 0.0
    %643 = vmatpush1.msra.mxu0 0.0
    %644 = vmatprep.subr.mxu0 0.0
    %645 = vmatpush1.msra.mxu0 0.0
    %646 = vmatprep.subr.mxu0 0.0
    %647 = vmatpush1.msra.mxu0 0.0
    %648 = vmatprep.subr.mxu0 0.0
    %649 = vmatpush1.msra.mxu0 0.0
    %650 = vmatprep.subr.mxu0 0.0
    %651 = vmatpush1.msra.mxu0 0.0
    %652 = vmatprep.subr.mxu0 0.0
    %653 = vmatpush1.msra.mxu0 0.0
    %654 = vmatprep.subr.mxu0 0.0
    %655 = vmatpush1.msra.mxu0 0.0
    %656 = vmatprep.subr.mxu0 0.0
    %657 = vmatpush1.msra.mxu0 0.0
    %658 = vmatprep.subr.mxu0 0.0
    %659 = vmatpush1.msra.mxu0 0.0
    %660 = vmatprep.subr.mxu0 0.0
    %661 = vmatpush1.msra.mxu0 0.0
    %662 = vmatprep.subr.mxu0 0.0
    %663 = vmatpush1.msra.mxu0 0.0
    %664 = vmatprep.subr.mxu0 0.0
    %665 = vmatpush1.msra.mxu0 0.0
    %666 = vmatprep.subr.mxu0 0.0
    %667 = vmatpush1.msra.mxu0 0.0
    %668 = vmatprep.subr.mxu0 0.0
    %669 = vmatpush1.msra.mxu0 0.0
    %670 = vmatprep.subr.mxu0 0.0
    %671 = vmatpush1.msra.mxu0 0.0
    %672 = vmatprep.subr.mxu0 0.0
    %673 = vmatpush1.msra.mxu0 0.0
    %674 = vmatprep.subr.mxu0 0.0
    %675 = vmatpush1.msra.mxu0 0.0
    %676 = vmatprep.subr.mxu0 0.0
    %677 = vmatpush1.msra.mxu0 0.0
    %678 = vmatprep.subr.mxu0 0.0
    %679 = vmatpush1.msra.mxu0 0.0
    %680 = vmatprep.mubr.f32.mxu0 0.0
    %681 = vmatmul.mubr.f32.gmra.mrb[0].mxu0 %v614
    %v682 = vpop.f32.mrb[0].mxu0
    %v683 = vadd.f32 0.0, %v682
    %v684 = vpop.f32.mrb[0].mxu0
    %685 = vdwg.mxu0
    %v686 = vadd.f32 %v612, %v683
    %687 = vst.msk [vmem:[#allocation2 + $0x6] sm:$0x1] %vm230, %v686
    %v688 = vld [vmem:[#allocation2 + $0x7] sm:$0x1]
    %v690 = vsel %vm155, %v686, 0
    %692 = vmatprep.subr.mxu0 0.0
    %693 = vmatpush1.msra.mxu0 %v149
    %694 = vmatprep.subr.mxu0 0.0
    %695 = vmatpush1.msra.mxu0 %v150
    %696 = vmatprep.subr.mxu0 0.0
    %697 = vmatpush1.msra.mxu0 %v151
    %698 = vmatprep.subr.mxu0 0.0
    %699 = vmatpush1.msra.mxu0 %v152
    %700 = vmatprep.subr.mxu0 0.0
    %701 = vmatpush1.msra.mxu0 0.0
    %702 = vmatprep.subr.mxu0 0.0
    %703 = vmatpush1.msra.mxu0 0.0
    %704 = vmatprep.subr.mxu0 0.0
    %705 = vmatpush1.msra.mxu0 0.0
    %706 = vmatprep.subr.mxu0 0.0
    %707 = vmatpush1.msra.mxu0 0.0
    %708 = vmatprep.subr.mxu0 0.0
    %709 = vmatpush1.msra.mxu0 0.0
    %710 = vmatprep.subr.mxu0 0.0
    %711 = vmatpush1.msra.mxu0 0.0
    %712 = vmatprep.subr.mxu0 0.0
    %713 = vmatpush1.msra.mxu0 0.0
    %714 = vmatprep.subr.mxu0 0.0
    %715 = vmatpush1.msra.mxu0 0.0
    %716 = vmatprep.subr.mxu0 0.0
    %717 = vmatpush1.msra.mxu0 0.0
    %718 = vmatprep.subr.mxu0 0.0
    %719 = vmatpush1.msra.mxu0 0.0
    %720 = vmatprep.subr.mxu0 0.0
    %721 = vmatpush1.msra.mxu0 0.0
    %722 = vmatprep.subr.mxu0 0.0
    %723 = vmatpush1.msra.mxu0 0.0
    %724 = vmatprep.subr.mxu0 0.0
    %725 = vmatpush1.msra.mxu0 0.0
    %726 = vmatprep.subr.mxu0 0.0
    %727 = vmatpush1.msra.mxu0 0.0
    %728 = vmatprep.subr.mxu0 0.0
    %729 = vmatpush1.msra.mxu0 0.0
    %730 = vmatprep.subr.mxu0 0.0
    %731 = vmatpush1.msra.mxu0 0.0
    %732 = vmatprep.subr.mxu0 0.0
    %733 = vmatpush1.msra.mxu0 0.0
    %734 = vmatprep.subr.mxu0 0.0
    %735 = vmatpush1.msra.mxu0 0.0
    %736 = vmatprep.subr.mxu0 0.0
    %737 = vmatpush1.msra.mxu0 0.0
    %738 = vmatprep.subr.mxu0 0.0
    %739 = vmatpush1.msra.mxu0 0.0
    %740 = vmatprep.subr.mxu0 0.0
    %741 = vmatpush1.msra.mxu0 0.0
    %742 = vmatprep.subr.mxu0 0.0
    %743 = vmatpush1.msra.mxu0 0.0
    %744 = vmatprep.subr.mxu0 0.0
    %745 = vmatpush1.msra.mxu0 0.0
    %746 = vmatprep.subr.mxu0 0.0
    %747 = vmatpush1.msra.mxu0 0.0
    %748 = vmatprep.subr.mxu0 0.0
    %749 = vmatpush1.msra.mxu0 0.0
    %750 = vmatprep.subr.mxu0 0.0
    %751 = vmatpush1.msra.mxu0 0.0
    %752 = vmatprep.subr.mxu0 0.0
    %753 = vmatpush1.msra.mxu0 0.0
    %754 = vmatprep.subr.mxu0 0.0
    %755 = vmatpush1.msra.mxu0 0.0
    %756 = vmatprep.mubr.f32.mxu0 0.0
    %757 = vmatmul.mubr.f32.gmra.mrb[0].mxu0 %v690
    %v758 = vpop.f32.mrb[0].mxu0
    %v759 = vadd.f32 0.0, %v758
    %v760 = vpop.f32.mrb[0].mxu0
    %761 = vdwg.mxu0
    %v762 = vadd.f32 %v688, %v759
    %763 = vst.msk [vmem:[#allocation2 + $0x7] sm:$0x1] %vm230, %v762
    %v764 = vld [vmem:[#allocation2] sm:$0xff]
    %765 = vst.msk [vmem:[#allocation10] sm:$0xff] %vm155, %v764
    %vm766 = vcmask 326912
    %v767 = vsel %vm766, %v764, -inf
    %768 = vmax.xlane.f32.xlu0 %v767
    %v769 = vpop.xlane.xlu0 %768
    %v770 = vsub.f32 %v764, %v769
    %v771 = vmul.f32 %v770, 1.442695
    %v772 = vpow.pop %v771
    %774 = vrot.lane.b32.xlu0 %v772, 96
    %v775 = vpop.permute.xlu0 %774
    %vm777 = vcmask 64512
    %v778 = vsel %vm777, %v775, 0.0
    %779 = vadd.xlane.f32.xlu0 %v778
    %v780 = vpop.xlane.xlu0 %779
    %v781 = vrcp.pop %v780
    %v782 = vmul.f32 %v772, %v781
    %784 = vrot.lane.b32.xlu0 %v782, 96
    %v785 = vpop.permute.xlu0 %784
    %787 = vst.msk [vmem:[#allocation9] sm:$0xff] %vm777, %v785
    // Predicated region
    $region34: #{tpu_custom_call.1} parent=1 // pred_check
      _
    $region35: #{tpu_custom_call.1} parent=1 // pred_check_branch
      %789 = sbr.rel (0) target = $region37
    $region36: #{tpu_custom_call.1} parent=1 // pred_region
      %s791 = ssub.s32 128, 128
      %792 = vsyncadd [#allocation5], %s791
      %s794 = sshll.u32 [#allocation9], 4
      %s795 = int_to_ptr.vmem [resolvable:$true] %s794
      %797 = dma.vmem_to_hbm [thread:$0]  %s795, 128, %s5, [#allocation5]
    $region37: #{tpu_custom_call.1} parent=1 // pred_fallthru
      _
    // Predicated region
    $region38: #{tpu_custom_call.1} parent=1 // pred_check
      _
    $region39: #{tpu_custom_call.1} parent=1 // pred_check_branch
      %799 = sbr.rel (0) target = $region41
    $region40: #{tpu_custom_call.1} parent=1 // pred_region
      %s801 = ssub.s32 128, 128
      %802 = vsyncadd [#allocation11], %s801
      %s804 = sshll.u32 [#allocation10], 4
      %s805 = int_to_ptr.vmem [resolvable:$true] %s804
      %807 = dma.vmem_to_hbm [thread:$0]  %s805, 128, %s6, [#allocation11]
    $region41: #{tpu_custom_call.1} parent=1 // pred_fallthru
      _
    // Predicated region
    $region42: #{tpu_custom_call.1} parent=1 // pred_check
      _
    $region43: #{tpu_custom_call.1} parent=1 // pred_check_branch
      %809 = sbr.rel (0) target = $region45
    $region44: #{tpu_custom_call.1} parent=1 // pred_region
      %810 = dma.done [#allocation5], 128
    $region45: #{tpu_custom_call.1} parent=1 // pred_fallthru
      _
    // Predicated region
    $region46: #{tpu_custom_call.1} parent=1 // pred_check
      _
    $region47: #{tpu_custom_call.1} parent=1 // pred_check_branch
      %812 = sbr.rel (0) target = $region49
    $region48: #{tpu_custom_call.1} parent=1 // pred_region
      %813 = dma.done [#allocation11], 128
    $region49: #{tpu_custom_call.1} parent=1 // pred_fallthru
      _
    %814 = vsyncpa [#allocation4], 1
    %815 = vsyncpa [#allocation7], 1
    %816 = vsyncpa [#allocation5], 1
    %817 = vsyncpa [#allocation11], 1

</llo_original>
